<compile_context>
chip_gen: v7x
topology: tpu7x:2x2x1
jax: 0.10.0
libtpu: 0.0.40
codegen_flags: <defaults>
</compile_context>

<pallas_src>
import functools

import jax
import jax.numpy as jnp
import numpy as np
from jax import lax
from jax.experimental import pallas as pl
from jax.experimental.pallas import tpu as pltpu


def _pe_dropout_kernel(seed_ref, x_ref, pe_ref, o_ref, *, p, training):
    # Broadcast-add of the (tiled) PE row: (TILE_ROWS, LANES) + (1, LANES).
    val = x_ref[...] + pe_ref[...]

    if training and p > 0.0:
        rows, lanes = val.shape  # static block shape
        # Global element index -> counter-based hash -> keep mask.
        base = pl.program_id(0) * rows
        rid = lax.broadcasted_iota(jnp.int32, val.shape, 0)
        cid = lax.broadcasted_iota(jnp.int32, val.shape, 1)
        gidx = ((rid + base) * lanes + cid).astype(jnp.uint32)

        seed = seed_ref[0].astype(jnp.uint32)
        h = gidx ^ (seed * jnp.uint32(0x9E3779B9))
        # lowbias32-style mixer (pure 32-bit int ops on the VPU).
        h = h ^ (h >> 16)
        h = h * jnp.uint32(0x7FEB352D)
        h = h ^ (h >> 15)
        h = h * jnp.uint32(0x846CA68B)
        h = h ^ (h >> 16)

        # Integer-only threshold compare on the top 24 bits (no f32 convert).
        hi24 = (h >> 8).astype(jnp.int32)
        thr = int(round(p * (1 << 24)))
        keep = hi24 >= thr

        scale = jnp.asarray(1.0 / (1.0 - p), dtype=val.dtype)
        val = jnp.where(keep, val * scale, jnp.zeros_like(val))

    o_ref[...] = val.astype(o_ref.dtype)


def make_positional_encoding(num_hiddens, max_len=1000):
    """Deterministic PE buffer, identical to the PyTorch __init__."""
    position = jnp.arange(max_len, dtype=jnp.float32).reshape(-1, 1)
    div = jnp.power(
        jnp.float32(1000.0),
        jnp.arange(0, num_hiddens, 2, dtype=jnp.float32) / num_hiddens,
    )
    angles = position / div                              # (max_len, H//2)
    pe = jnp.zeros((1, max_len, num_hiddens), dtype=jnp.float32)
    pe = pe.at[:, :, 0::2].set(jnp.sin(angles))
    pe = pe.at[:, :, 1::2].set(jnp.cos(angles))
    return pe


def positional_encoding_forward(x, pe, *, dropout_p=0.0, training=False, seed=0):
    B, S, H = x.shape
    max_len = pe.shape[1]
    assert S < max_len, f"seq_len={S} must be < max_len={max_len} (PE row index)"

    # PE[:, X.shape[1], :] -> one row at (static) index S.
    pe_row = pe[0, S, :].astype(x.dtype)                 # (H,)

    rows_bs = B * S
    # Lane-dense 2D view of x (+ matching PE row layout).
    if H % 128 == 0:
        lanes = H
        rows = rows_bs
        x2 = x.reshape(rows, lanes)
        pe2 = pe_row.reshape(1, lanes)
    elif 128 % H == 0 and (rows_bs * H) % 128 == 0:
        lanes = 128
        rows = rows_bs * H // 128
        x2 = x.reshape(rows, lanes)
        pe2 = jnp.tile(pe_row, 128 // H).reshape(1, lanes)   # PE repeats per position
    else:
        # Fallback: not lane-dense (masked stores), still correct.
        lanes = H
        rows = rows_bs
        x2 = x.reshape(rows, lanes)
        pe2 = pe_row.reshape(1, lanes)

    # Tile the row axis; ~2 MiB per tile so double-buffered in+out fits every
    # generation's default scoped VMEM (16 MiB on v5e, 32 MiB on v6e/v7x).
    bytes_per_row = lanes * x2.dtype.itemsize
    target_tile_bytes = 2 * 1024 * 1024
    max_rows_per_tile = max(1, target_tile_bytes // bytes_per_row)
    if rows <= max_rows_per_tile:
        tile_rows = rows
    else:
        tile_rows = max(8, (max_rows_per_tile // 8) * 8)
    grid = (pl.cdiv(rows, tile_rows),)

    seed_arr = jnp.asarray([seed], dtype=jnp.int32)
    kernel = functools.partial(
        _pe_dropout_kernel, p=float(dropout_p), training=bool(training)
    )

    out2 = pl.pallas_call(
        kernel,
        out_shape=jax.ShapeDtypeStruct((rows, lanes), x.dtype),
        grid_spec=pltpu.PrefetchScalarGridSpec(
            num_scalar_prefetch=1,                       # seed -> SMEM
            grid=grid,
            in_specs=[
                pl.BlockSpec((tile_rows, lanes), lambda i, seed: (i, 0)),  # x tile
                pl.BlockSpec((1, lanes), lambda i, seed: (0, 0)),          # PE row
            ],
            out_specs=pl.BlockSpec((tile_rows, lanes), lambda i, seed: (i, 0)),
        ),
        compiler_params=pltpu.CompilerParams(
            dimension_semantics=("parallel",),           # shard rows on v7x's 2 TCs
        ),
    )(seed_arr, x2, pe2)

    return out2.reshape(B, S, H)


if __name__ == "__main__":
    B, S, H, MAX_LEN = 2, 8, 32, 1000
    dropout_p = 0.1

    key = jax.random.PRNGKey(0)
    x = jax.random.normal(key, (B, S, H), dtype=jnp.float32)

    pe = make_positional_encoding(H, MAX_LEN)

    # Eval mode (dropout = identity): must match pure-JAX reference.
    out_eval = positional_encoding_forward(x, pe, dropout_p=dropout_p, training=False)
    out_eval = jax.block_until_ready(out_eval)

    ref = x + pe[:, S, :].reshape(1, 1, H)
    np.testing.assert_allclose(
        np.asarray(out_eval), np.asarray(ref), rtol=1e-6, atol=1e-6
    )

    # Training mode: in-kernel counter-hash dropout (deterministic given seed).
    out_train = positional_encoding_forward(
        x, pe, dropout_p=dropout_p, training=True, seed=1234
    )
    out_train = jax.block_until_ready(out_train)
    assert out_train.shape == (B, S, H)

    xp = np.asarray(ref)
    ot = np.asarray(out_train)
    scaled = xp / (1.0 - dropout_p)
    # Every output element must be either dropped (0) or kept-and-scaled.
    ok = np.isclose(ot, 0.0, atol=1e-6) | np.isclose(ot, scaled, rtol=1e-5, atol=1e-6)
    assert ok.all(), "dropout output has elements that are neither 0 nor scaled"
    keep_frac = np.mean(~np.isclose(ot, 0.0, atol=1e-6))
    assert 0.5 < keep_frac < 1.0, f"suspicious keep fraction {keep_frac}"

    print("KERNEL_OK")
</pallas_src>

<mosaic_0001>
module attributes {stable_mosaic.version = 11 : i64} {
  func.func @_pe_dropout_kernel(%arg0: i32, %arg1: memref<1xi32, #tpu.memory_space<smem>>, %arg2: memref<4x128xf32, #tpu.memory_space<vmem>>, %arg3: memref<1x128xf32, #tpu.memory_space<vmem>>, %arg4: memref<4x128xf32, #tpu.memory_space<vmem>>) attributes {dimension_semantics = [#tpu.dimension_semantics<parallel>], iteration_bounds = array<i64: 1>, scalar_prefetch = 1 : i64, scratch_operands = 0 : i64, tpu.core_type = #tpu.core_type<tc>, window_params = [{transform_indices = @transform_0, window_bounds = array<i64: 4, 128>}, {pipeline_mode = #tpu.pipeline_mode<synchronous>, transform_indices = @transform_1, window_bounds = array<i64: 1, 128>}, {transform_indices = @transform_2, window_bounds = array<i64: 4, 128>}]} {
    %c0 = arith.constant 0 : index
    %c0_0 = arith.constant 0 : index
    %0 = vector.load %arg2[%c0, %c0_0] : memref<4x128xf32, #tpu.memory_space<vmem>>, vector<4x128xf32>
    %c0_1 = arith.constant 0 : index
    %c0_2 = arith.constant 0 : index
    %1 = vector.load %arg3[%c0_1, %c0_2] : memref<1x128xf32, #tpu.memory_space<vmem>>, vector<1x128xf32>
    %2 = vector.broadcast %1 : vector<1x128xf32> to vector<4x128xf32>
    %3 = arith.addf %0, %2 : vector<4x128xf32>
    %c0_3 = arith.constant 0 : index
    %c0_4 = arith.constant 0 : index
    %4 = vector.load %arg4[%c0_3, %c0_4] : memref<4x128xf32, #tpu.memory_space<vmem>>, vector<4x128xf32>
    tpu.vector_store %arg4[%c0_3, %c0_4], %3 {strides = array<i32>} : memref<4x128xf32, #tpu.memory_space<vmem>>, vector<4x128xf32>,
    return
  }
  func.func @transform_0(%arg0: i32, %arg1: memref<1xi32, #tpu.memory_space<smem>>) -> (i32, i32) {
    %c0_i32 = arith.constant 0 : i32
    %c0_i32_0 = arith.constant 0 : i32
    return %arg0, %c0_i32 : i32, i32
  }
  func.func @transform_1(%arg0: i32, %arg1: memref<1xi32, #tpu.memory_space<smem>>) -> (i32, i32) {
    %c0_i32 = arith.constant 0 : i32
    %c0_i32_0 = arith.constant 0 : i32
    %c0_i32_1 = arith.constant 0 : i32
    return %c0_i32, %c0_i32_0 : i32, i32
  }
  func.func @transform_2(%arg0: i32, %arg1: memref<1xi32, #tpu.memory_space<smem>>) -> (i32, i32) {
    %c0_i32 = arith.constant 0 : i32
    %c0_i32_0 = arith.constant 0 : i32
    return %arg0, %c0_i32 : i32, i32
  }
}

</mosaic_0001>

<llo_original>
// kernel: tpu_custom_call.1
$region0: #{tpu_custom_call.1}
  #allocation0 [shape = 'u32[]', space=smem, size = 0x4, offset = 0x4, fixed_abs, tag = 'smem constant byte address 0x4 - core index']
  #allocation1 [shape = 'u32[144,128]{1,0:T(1,128)}', space=vmem, size = 0x12000, scoped, tag = 'internal scratch']
  #allocation2 [shape = 's32[1]{0}', space=sflag, size = 0x4, scoped, tag = 'scoped memory for tpu_custom_call.1']
  #allocation3 [shape = 's32[1]{0:T(128)S(6)}', space=smem, size = 0x200, scoped, tag = 'prefetched SMEM operand 0']
  %s0 = inlined_call_operand.<no memory space> [shape: s32[1], index: 0, kind: input, shape index: {}]
  %s1 = inlined_call_operand.hbm [shape: f32[4,128], index: 1, kind: input, shape index: {}]
  %s2 = inlined_call_operand.vmem [shape: f32[1,128], index: 2, kind: input, shape index: {}]
  %s3 = inlined_call_operand.hbm [shape: f32[4,128], index: 3, kind: output, shape index: {}]
  %s4 = sld [smem:[#allocation0]]
  $region22: #{tpu_custom_call.1} parent=0
    _
  %s6 = ssub.s32 1, %s4
  %s7 = scalar_select 0, %s6, %s4
  %8 = sst [smem:[#allocation3]] %s0
  $region1: #{tpu_custom_call.1} parent=0
    #allocation4 [shape = 'u8[2048]{0}', space=vmem, size = 0x800, scoped, tag = 'input window, operand 1, single buffered']
    #allocation5 [shape = 's32[1]{0}', space=sflag, size = 0x4, scoped, tag = 'scoped memory for tpu_custom_call.1']
    #allocation6 [shape = 's32[1]{0}', space=sflag, size = 0x4, scoped, tag = 'scoped memory for tpu_custom_call.1']
    #allocation7 [shape = 'u8[2048]{0}', space=vmem, size = 0x800, scoped, tag = 'output window, operand 0, single buffered']
    %9 = vsyncpa [#allocation5], 0
    %10 = vsyncpa [#allocation6], 0
    // Predicated region
    $region2: #{tpu_custom_call.1} parent=1 // pred_check
      _
    $region3: #{tpu_custom_call.1} parent=1 // pred_check_branch
      %12 = sbr.rel (0) target = $region5
    $region4: #{tpu_custom_call.1} parent=1 // pred_region
      %s14 = ssub.s32 64, 64
      %15 = vsyncadd [#allocation5], %s14
      %s17 = sshll.u32 [#allocation4], 4
      %s18 = int_to_ptr.vmem [resolvable:$true] %s17
      %20 = dma.hbm_to_vmem [thread:$0]  %s1, 64, %s18, [#allocation5]
    $region5: #{tpu_custom_call.1} parent=1 // pred_fallthru
      _
    // Predicated region
    $region6: #{tpu_custom_call.1} parent=1 // pred_check
      _
    $region7: #{tpu_custom_call.1} parent=1 // pred_check_branch
      %22 = sbr.rel (0) target = $region9
    $region8: #{tpu_custom_call.1} parent=1 // pred_region
      _
    $region9: #{tpu_custom_call.1} parent=1 // pred_fallthru
      _
    // Predicated region
    $region10: #{tpu_custom_call.1} parent=1 // pred_check
      _
    $region11: #{tpu_custom_call.1} parent=1 // pred_check_branch
      %24 = sbr.rel (0) target = $region13
    $region12: #{tpu_custom_call.1} parent=1 // pred_region
      %25 = dma.done [#allocation5], 64
    $region13: #{tpu_custom_call.1} parent=1 // pred_fallthru
      _
    %v26 = vld [vmem:[#allocation4] sm:$0xf]
    %v27 = vld [vmem:[%s2] sm:$0x1]
    %v29 = vlaneseq
    %v30 = vshrl.u32 %v29, 7
    %v31 = vsub.s32 0, %v30
    %v32 = vrot.slane %v27, %v31
    %v34 = vadd.f32 %v26, %v32
    %35 = vst [vmem:[#allocation7] sm:$0xf] %v34
    // Predicated region
    $region14: #{tpu_custom_call.1} parent=1 // pred_check
      _
    $region15: #{tpu_custom_call.1} parent=1 // pred_check_branch
      %37 = sbr.rel (0) target = $region17
    $region16: #{tpu_custom_call.1} parent=1 // pred_region
      %s39 = ssub.s32 64, 64
      %40 = vsyncadd [#allocation6], %s39
      %s42 = sshll.u32 [#allocation7], 4
      %s43 = int_to_ptr.vmem [resolvable:$true] %s42
      %45 = dma.vmem_to_hbm [thread:$0]  %s43, 64, %s3, [#allocation6]
    $region17: #{tpu_custom_call.1} parent=1 // pred_fallthru
      _
    // Predicated region
    $region18: #{tpu_custom_call.1} parent=1 // pred_check
      _
    $region19: #{tpu_custom_call.1} parent=1 // pred_check_branch
      %47 = sbr.rel (0) target = $region21
    $region20: #{tpu_custom_call.1} parent=1 // pred_region
      %48 = dma.done [#allocation6], 64
    $region21: #{tpu_custom_call.1} parent=1 // pred_fallthru
      _
    %49 = vsyncpa [#allocation5], 1
    %50 = vsyncpa [#allocation6], 1

</llo_original>
